<compile_context>
chip_gen: v6e
topology: v6e:2x2x1
jax: 0.10.0
libtpu: 0.0.40
codegen_flags: <defaults>
</compile_context>

<pallas_src>
import functools

import jax
import jax.numpy as jnp
import numpy as np
from jax.experimental import pallas as pl
from jax.experimental.pallas import tpu as pltpu


def cse_kernel(x_ref, w1t_ref, b1_ref, w2t_ref, b2_ref, o_ref, acc_ref, *, inv_hw):
    # x_ref  : (TN, C, THW)  streamed activation tile
    # w1t_ref: (C, Cmid)     conv1 weight, pre-transposed
    # b1_ref : (1, Cmid)
    # w2t_ref: (Cmid, C)     conv2 weight, pre-transposed
    # b2_ref : (1, C)
    # o_ref  : (TN, C)       lane-dense gate output for this batch tile
    # acc_ref: (TN, C) f32   pooled-sum accumulator (resident across HW tiles)
    k = pl.program_id(1)

    @pl.when(k == 0)
    def _():
        acc_ref[...] = jnp.zeros_like(acc_ref)

    # Partial global-average-pool: accumulate the sum over this HW tile in f32.
    x = x_ref[...].astype(jnp.float32)                      # (TN, C, THW)
    acc_ref[...] += jnp.sum(x, axis=-1)                     # (TN, C)

    @pl.when(k == pl.num_programs(1) - 1)
    def _():
        pooled = acc_ref[...] * inv_hw                      # mean, scaled once
        h = jnp.dot(pooled, w1t_ref[...],
                    preferred_element_type=jnp.float32) + b1_ref[...]
        h = jnp.maximum(h, 0.0)                             # ReLU
        y = jnp.dot(h, w2t_ref[...],
                    preferred_element_type=jnp.float32) + b2_ref[...]
        o_ref[...] = jax.nn.sigmoid(y).astype(o_ref.dtype)  # sigmoid gate


def _pick_hw_tile(HW, C, TN, itemsize, budget_bytes):
    """Largest multiple-of-128 tile that divides HW and fits the VMEM budget."""
    if HW % 128 != 0:
        return HW                    # fall back to the full (untiled) HW axis
    max_thw = max(128, budget_bytes // max(1, TN * C * itemsize))
    thw = max(128, min((max_thw // 128) * 128, HW))
    while HW % thw != 0:
        thw -= 128
    return thw


def cse_forward(x, w1, b1, w2, b2, *, max_hw_tile=None, vmem_block_budget=2 << 20):
    """x: (N, C, H, W).  w1: (Cmid, C), b1: (Cmid,), w2: (C, Cmid), b2: (C,).

    Returns the gate, shape (N, C, 1, 1), dtype of x.
    """
    N, C, H, W = x.shape
    HW = H * W
    Cmid = w1.shape[0]

    x_flat = x.reshape(N, C, HW)                 # no dtype cast: stream native dtype

    # Tiny per-kernel parameter prep (one-time, outside the hot loop).
    w1t = jnp.asarray(w1, jnp.float32).T.reshape(C, Cmid)
    w2t = jnp.asarray(w2, jnp.float32).T.reshape(Cmid, C)
    b1r = jnp.asarray(b1, jnp.float32).reshape(1, Cmid)
    b2r = jnp.asarray(b2, jnp.float32).reshape(1, C)

    # Batch tile: second-to-last dim of the (TN, C) output block must be a
    # multiple of 8 or equal to N.
    TN = 8 if (N % 8 == 0) else N

    # HW tile: multiple of 128 dividing HW, sized to a conservative per-block
    # VMEM budget (double-buffered by BlockSpec; keeps v5e's 16 MiB scoped
    # default safe while staying >=512 lanes whenever HW allows).
    THW = _pick_hw_tile(HW, C, TN, x_flat.dtype.itemsize, vmem_block_budget)
    if max_hw_tile is not None and HW % max_hw_tile == 0:
        THW = min(THW, max_hw_tile)

    grid = (pl.cdiv(N, TN), HW // THW)

    out = pl.pallas_call(
        functools.partial(cse_kernel, inv_hw=float(1.0 / HW)),
        out_shape=jax.ShapeDtypeStruct((N, C), x.dtype),
        grid_spec=pltpu.PrefetchScalarGridSpec(
            num_scalar_prefetch=0,
            grid=grid,
            in_specs=[
                pl.BlockSpec((TN, C, THW), lambda n, k: (n, 0, k)),  # x tile
                pl.BlockSpec((C, Cmid), lambda n, k: (0, 0)),        # w1^T
                pl.BlockSpec((1, Cmid), lambda n, k: (0, 0)),        # b1
                pl.BlockSpec((Cmid, C), lambda n, k: (0, 0)),        # w2^T
                pl.BlockSpec((1, C), lambda n, k: (0, 0)),           # b2
            ],
            out_specs=pl.BlockSpec((TN, C), lambda n, k: (n, 0)),    # lane-dense gate
            scratch_shapes=[pltpu.VMEM((TN, C), jnp.float32)],       # pooled-sum acc
        ),
        compiler_params=pltpu.CompilerParams(
            dimension_semantics=("parallel", "arbitrary")),
    )(x_flat, w1t, b1r, w2t, b2r)

    return out.reshape(N, C, 1, 1)


def _reference(x, w1, b1, w2, b2):
    # Pure-JAX reference mirroring the PyTorch forward (f32 math).
    xf = x.astype(jnp.float32)
    pooled = jnp.mean(xf, axis=(2, 3))                        # (N, C)
    h = jnp.maximum(pooled @ w1.T + b1, 0.0)                  # (N, Cmid)
    y = jax.nn.sigmoid(h @ w2.T + b2)                         # (N, C)
    return y[:, :, None, None].astype(x.dtype)


if __name__ == "__main__":
    key = jax.random.PRNGKey(0)
    N, C, H, W = 2, 4, 16, 16
    Cmid = C // 2

    k_x, k_w1, k_b1, k_w2, k_b2 = jax.random.split(key, 5)
    x = jax.random.normal(k_x, (N, C, H, W), dtype=jnp.float32)

    # Deterministic synthetic parameters (1x1 conv weights squeezed to 2-D).
    bound1 = 1.0 / np.sqrt(C)
    bound2 = 1.0 / np.sqrt(Cmid)
    w1 = jax.random.uniform(k_w1, (Cmid, C), minval=-bound1, maxval=bound1,
                            dtype=jnp.float32)
    b1 = jax.random.uniform(k_b1, (Cmid,), minval=-bound1, maxval=bound1,
                            dtype=jnp.float32)
    w2 = jax.random.uniform(k_w2, (C, Cmid), minval=-bound2, maxval=bound2,
                            dtype=jnp.float32)
    b2 = jax.random.uniform(k_b2, (C,), minval=-bound2, maxval=bound2,
                            dtype=jnp.float32)

    ref = jax.block_until_ready(_reference(x, w1, b1, w2, b2))

    # 1) Default tiling (single HW tile at this small shape).
    out = jax.block_until_ready(cse_forward(x, w1, b1, w2, b2))
    assert out.shape == (N, C, 1, 1)
    np.testing.assert_allclose(np.asarray(out), np.asarray(ref),
                               rtol=1e-5, atol=1e-5)

    # 2) Force a multi-step HW reduction (THW=128 -> 2 accumulation steps)
    #    to exercise the pl.when init/accumulate/finalize path.
    out2 = jax.block_until_ready(cse_forward(x, w1, b1, w2, b2, max_hw_tile=128))
    np.testing.assert_allclose(np.asarray(out2), np.asarray(ref),
                               rtol=1e-5, atol=1e-5)

    # TODO(synk): if the surrounding model multiplies x by this gate, fuse the
    # gate-apply into the consumer kernel to avoid a second HBM pass over x.
    print("KERNEL_OK")
</pallas_src>

<mosaic_0001>
module attributes {stable_mosaic.version = 11 : i64} {
  func.func @cse_kernel(%arg0: i32, %arg1: i32, %arg2: memref<2x4x256xf32, #tpu.memory_space<vmem>>, %arg3: memref<4x2xf32, #tpu.memory_space<vmem>>, %arg4: memref<1x2xf32, #tpu.memory_space<vmem>>, %arg5: memref<2x4xf32, #tpu.memory_space<vmem>>, %arg6: memref<1x4xf32, #tpu.memory_space<vmem>>, %arg7: memref<2x4xf32, #tpu.memory_space<vmem>>, %arg8: memref<2x4xf32, #tpu.memory_space<vmem>>) attributes {dimension_semantics = [#tpu.dimension_semantics<parallel>, #tpu.dimension_semantics<arbitrary>], iteration_bounds = array<i64: 1, 1>, scalar_prefetch = 0 : i64, scratch_operands = 1 : i64, tpu.core_type = #tpu.core_type<tc>, window_params = [{transform_indices = @transform_0, window_bounds = array<i64: 2, 4, 256>}, {pipeline_mode = #tpu.pipeline_mode<synchronous>, transform_indices = @transform_1, window_bounds = array<i64: 4, 2>}, {pipeline_mode = #tpu.pipeline_mode<synchronous>, transform_indices = @transform_2, window_bounds = array<i64: 1, 2>}, {pipeline_mode = #tpu.pipeline_mode<synchronous>, transform_indices = @transform_3, window_bounds = array<i64: 2, 4>}, {pipeline_mode = #tpu.pipeline_mode<synchronous>, transform_indices = @transform_4, window_bounds = array<i64: 1, 4>}, {transform_indices = @transform_5, window_bounds = array<i64: 2, 4>}]} {
    %c0_i32 = arith.constant 0 : i32
    %0 = arith.cmpi eq, %arg1, %c0_i32 : i32
    %1 = arith.extui %0 : i1 to i32
    %c0_i32_0 = arith.constant 0 : i32
    %2 = arith.cmpi ne, %1, %c0_i32_0 : i32
    scf.if %2 {
      %cst_9 = arith.constant 0.000000e+00 : f32
      %11 = vector.broadcast %cst_9 : f32 to vector<2x4xf32>
      %c0_10 = arith.constant 0 : index
      %c0_11 = arith.constant 0 : index
      %12 = vector.load %arg8[%c0_10, %c0_11] : memref<2x4xf32, #tpu.memory_space<vmem>>, vector<2x4xf32>
      tpu.vector_store %arg8[%c0_10, %c0_11], %11 {strides = array<i32>} : memref<2x4xf32, #tpu.memory_space<vmem>>, vector<2x4xf32>,
    } else {
    }
    %c0 = arith.constant 0 : index
    %c0_1 = arith.constant 0 : index
    %c0_2 = arith.constant 0 : index
    %3 = vector.load %arg2[%c0, %c0_1, %c0_2] : memref<2x4x256xf32, #tpu.memory_space<vmem>>, vector<2x4x256xf32>
    %c0_3 = arith.constant 0 : index
    %c0_4 = arith.constant 0 : index
    %4 = vector.load %arg8[%c0_3, %c0_4] : memref<2x4xf32, #tpu.memory_space<vmem>>, vector<2x4xf32>
    %cst = arith.constant dense<0.000000e+00> : vector<2x4xf32>
    %5 = vector.multi_reduction <add>, %3, %cst [2] : vector<2x4x256xf32> to vector<2x4xf32>
    %6 = arith.addf %4, %5 : vector<2x4xf32>
    %c0_5 = arith.constant 0 : index
    %c0_6 = arith.constant 0 : index
    %7 = vector.load %arg8[%c0_5, %c0_6] : memref<2x4xf32, #tpu.memory_space<vmem>>, vector<2x4xf32>
    tpu.vector_store %arg8[%c0_5, %c0_6], %6 {strides = array<i32>} : memref<2x4xf32, #tpu.memory_space<vmem>>, vector<2x4xf32>,
    %c0_i32_7 = arith.constant 0 : i32
    %8 = arith.cmpi eq, %arg1, %c0_i32_7 : i32
    %9 = arith.extui %8 : i1 to i32
    %c0_i32_8 = arith.constant 0 : i32
    %10 = arith.cmpi ne, %9, %c0_i32_8 : i32
    scf.if %10 {
      %c0_9 = arith.constant 0 : index
      %c0_10 = arith.constant 0 : index
      %11 = vector.load %arg8[%c0_9, %c0_10] : memref<2x4xf32, #tpu.memory_space<vmem>>, vector<2x4xf32>
      %cst_11 = arith.constant 3.906250e-03 : f32
      %12 = vector.broadcast %cst_11 : f32 to vector<2x4xf32>
      %13 = arith.mulf %11, %12 : vector<2x4xf32>
      %c0_12 = arith.constant 0 : index
      %c0_13 = arith.constant 0 : index
      %14 = vector.load %arg3[%c0_12, %c0_13] : memref<4x2xf32, #tpu.memory_space<vmem>>, vector<4x2xf32>
      %cst_14 = arith.constant dense<0.000000e+00> : vector<2x2xf32>
      %15 = tpu.matmul %13, %14, %cst_14 {dimension_numbers = #tpu.dot_dimension_numbers<[1], [0], [0], [1], [0, 0, 1, 1], [], []>} : vector<2x4xf32>, vector<4x2xf32>, vector<2x2xf32> -> vector<2x2xf32>
      %c0_15 = arith.constant 0 : index
      %c0_16 = arith.constant 0 : index
      %16 = vector.load %arg4[%c0_15, %c0_16] : memref<1x2xf32, #tpu.memory_space<vmem>>, vector<1x2xf32>
      %17 = vector.broadcast %16 : vector<1x2xf32> to vector<2x2xf32>
      %18 = arith.addf %15, %17 : vector<2x2xf32>
      %cst_17 = arith.constant 0.000000e+00 : f32
      %19 = vector.broadcast %cst_17 : f32 to vector<2x2xf32>
      %20 = arith.maximumf %18, %19 : vector<2x2xf32>
      %c0_18 = arith.constant 0 : index
      %c0_19 = arith.constant 0 : index
      %21 = vector.load %arg5[%c0_18, %c0_19] : memref<2x4xf32, #tpu.memory_space<vmem>>, vector<2x4xf32>
      %cst_20 = arith.constant dense<0.000000e+00> : vector<2x4xf32>
      %22 = tpu.matmul %20, %21, %cst_20 {dimension_numbers = #tpu.dot_dimension_numbers<[1], [0], [0], [1], [0, 0, 1, 1], [], []>} : vector<2x2xf32>, vector<2x4xf32>, vector<2x4xf32> -> vector<2x4xf32>
      %c0_21 = arith.constant 0 : index
      %c0_22 = arith.constant 0 : index
      %23 = vector.load %arg6[%c0_21, %c0_22] : memref<1x4xf32, #tpu.memory_space<vmem>>, vector<1x4xf32>
      %24 = vector.broadcast %23 : vector<1x4xf32> to vector<2x4xf32>
      %25 = arith.addf %22, %24 : vector<2x4xf32>
      %26 = arith.negf %25 : vector<2x4xf32>
      %27 = math.exp %26 : vector<2x4xf32>
      %cst_23 = arith.constant 1.000000e+00 : f32
      %28 = vector.broadcast %cst_23 : f32 to vector<2x4xf32>
      %29 = arith.addf %28, %27 : vector<2x4xf32>
      %30 = arith.divf %28, %29 : vector<2x4xf32>
      %c0_24 = arith.constant 0 : index
      %c0_25 = arith.constant 0 : index
      %31 = vector.load %arg7[%c0_24, %c0_25] : memref<2x4xf32, #tpu.memory_space<vmem>>, vector<2x4xf32>
      tpu.vector_store %arg7[%c0_24, %c0_25], %30 {strides = array<i32>} : memref<2x4xf32, #tpu.memory_space<vmem>>, vector<2x4xf32>,
    } else {
    }
    return
  }
  func.func @transform_0(%arg0: i32, %arg1: i32) -> (i32, i32, i32) {
    %c0_i32 = arith.constant 0 : i32
    %c0_i32_0 = arith.constant 0 : i32
    return %arg0, %c0_i32, %arg1 : i32, i32, i32
  }
  func.func @transform_1(%arg0: i32, %arg1: i32) -> (i32, i32) {
    %c0_i32 = arith.constant 0 : i32
    %c0_i32_0 = arith.constant 0 : i32
    %c0_i32_1 = arith.constant 0 : i32
    return %c0_i32, %c0_i32_0 : i32, i32
  }
  func.func @transform_2(%arg0: i32, %arg1: i32) -> (i32, i32) {
    %c0_i32 = arith.constant 0 : i32
    %c0_i32_0 = arith.constant 0 : i32
    %c0_i32_1 = arith.constant 0 : i32
    return %c0_i32, %c0_i32_0 : i32, i32
  }
  func.func @transform_3(%arg0: i32, %arg1: i32) -> (i32, i32) {
    %c0_i32 = arith.constant 0 : i32
    %c0_i32_0 = arith.constant 0 : i32
    %c0_i32_1 = arith.constant 0 : i32
    return %c0_i32, %c0_i32_0 : i32, i32
  }
  func.func @transform_4(%arg0: i32, %arg1: i32) -> (i32, i32) {
    %c0_i32 = arith.constant 0 : i32
    %c0_i32_0 = arith.constant 0 : i32
    %c0_i32_1 = arith.constant 0 : i32
    return %c0_i32, %c0_i32_0 : i32, i32
  }
  func.func @transform_5(%arg0: i32, %arg1: i32) -> (i32, i32) {
    %c0_i32 = arith.constant 0 : i32
    %c0_i32_0 = arith.constant 0 : i32
    return %arg0, %c0_i32 : i32, i32
  }
}

</mosaic_0001>

<llo_original>
// kernel: tpu_custom_call.1
$region0: #{tpu_custom_call.1}
  #allocation0 [shape = 'u32[]', space=smem, size = 0x4, offset = 0x4, fixed_abs, tag = 'smem constant byte address 0x4 - core index']
  #allocation1 [shape = 'u32[144,128]{1,0:T(1,128)}', space=vmem, size = 0x12000, scoped, tag = 'internal scratch']
  #allocation2 [shape = 'f32[2,4]{1,0:T(2,128)}', space=vmem, size = 0x400, scoped, tag = 'scratch operand']
  %s0 = inlined_call_operand.hbm [shape: f32[2,4,256], index: 0, kind: input, shape index: {}]
  %s1 = inlined_call_operand.vmem [shape: f32[4,2], index: 1, kind: input, shape index: {}]
  %s2 = inlined_call_operand.vmem [shape: f32[1,2], index: 2, kind: input, shape index: {}]
  %s3 = inlined_call_operand.vmem [shape: f32[2,4], index: 3, kind: input, shape index: {}]
  %s4 = inlined_call_operand.vmem [shape: f32[1,4], index: 4, kind: input, shape index: {}]
  %s5 = inlined_call_operand.hbm [shape: f32[2,4], index: 5, kind: output, shape index: {}]
  %s6 = sld [smem:[#allocation0]]
  $region42: #{tpu_custom_call.1} parent=0
    _
  %s8 = ssub.s32 1, %s6
  %s9 = scalar_select 0, %s8, %s6
  $region1: #{tpu_custom_call.1} parent=0
    #allocation3 [shape = 'u8[8192]{0}', space=vmem, size = 0x2000, scoped, tag = 'input window, operand 0, single buffered']
    #allocation4 [shape = 's32[1]{0}', space=sflag, size = 0x4, scoped, tag = 'scoped memory for tpu_custom_call.1']
    #allocation5 [shape = 's32[1]{0}', space=sflag, size = 0x4, scoped, tag = 'scoped memory for tpu_custom_call.1']
    #allocation6 [shape = 'u8[1024]{0}', space=vmem, size = 0x400, scoped, tag = 'output window, operand 0, single buffered']
    %10 = vsyncpa [#allocation4], 0
    %11 = vsyncpa [#allocation5], 0
    // Predicated region
    $region2: #{tpu_custom_call.1} parent=1 // pred_check
      _
    $region3: #{tpu_custom_call.1} parent=1 // pred_check_branch
      %13 = sbr.rel (0) target = $region5
    $region4: #{tpu_custom_call.1} parent=1 // pred_region
      %s15 = ssub.s32 256, 256
      %16 = vsyncadd [#allocation4], %s15
      %s17 = sshll.u32 [#allocation3], 4
      %s18 = int_to_ptr.vmem [resolvable:$true] %s17
      %23 = dma.hbm_to_vmem [thread:$0]  %s0, 256, %s18, [#allocation4], 128, 128, 8
    $region5: #{tpu_custom_call.1} parent=1 // pred_fallthru
      _
    // Predicated region
    $region6: #{tpu_custom_call.1} parent=1 // pred_check
      _
    $region7: #{tpu_custom_call.1} parent=1 // pred_check_branch
      %25 = sbr.rel (0) target = $region9
    $region8: #{tpu_custom_call.1} parent=1 // pred_region
      _
    $region9: #{tpu_custom_call.1} parent=1 // pred_fallthru
      _
    // Predicated region
    $region10: #{tpu_custom_call.1} parent=1 // pred_check
      _
    $region11: #{tpu_custom_call.1} parent=1 // pred_check_branch
      %27 = sbr.rel (0) target = $region13
    $region12: #{tpu_custom_call.1} parent=1 // pred_region
      _
    $region13: #{tpu_custom_call.1} parent=1 // pred_fallthru
      _
    // Predicated region
    $region14: #{tpu_custom_call.1} parent=1 // pred_check
      _
    $region15: #{tpu_custom_call.1} parent=1 // pred_check_branch
      %29 = sbr.rel (0) target = $region17
    $region16: #{tpu_custom_call.1} parent=1 // pred_region
      _
    $region17: #{tpu_custom_call.1} parent=1 // pred_fallthru
      _
    // Predicated region
    $region18: #{tpu_custom_call.1} parent=1 // pred_check
      _
    $region19: #{tpu_custom_call.1} parent=1 // pred_check_branch
      %31 = sbr.rel (0) target = $region21
    $region20: #{tpu_custom_call.1} parent=1 // pred_region
      _
    $region21: #{tpu_custom_call.1} parent=1 // pred_fallthru
      _
    // Predicated region
    $region22: #{tpu_custom_call.1} parent=1 // pred_check
      _
    $region23: #{tpu_custom_call.1} parent=1 // pred_check_branch
      %33 = sbr.rel (0) target = $region25
    $region24: #{tpu_custom_call.1} parent=1 // pred_region
      %34 = dma.done [#allocation4], 256
    $region25: #{tpu_custom_call.1} parent=1 // pred_fallthru
      _
    %p35 = scmp.eq.s32.totalorder 0, 0
    // Predicated region
    $region26: #{tpu_custom_call.1} parent=1 // pred_check
      %p36 = pneg %p35
    $region27: #{tpu_custom_call.1} parent=1 // pred_check_branch
      %38 = sbr.rel (%p36) target = $region29
    $region28: #{tpu_custom_call.1} parent=1 // pred_region
      %vm39 = vcmask 25600
      %40 = vst.msk [vmem:[#allocation2] sm:$0x3] %vm39, 0.0
    $region29: #{tpu_custom_call.1} parent=1 // pred_fallthru
      _
    %v41 = vld [vmem:[#allocation3] sm:$0xff]
    %v42 = vld [vmem:[#allocation3 + $0x8] sm:$0xff]
    %v43 = vld [vmem:[#allocation2] sm:$0x3]
    %v46 = vcombine.high %v41, %v41
    %v47 = vcombine.high %v42, %v42
    %vm50 = vcmask 1043456
    %v51 = vsel %vm50, %v41, 0.0
    %v52 = vsel %vm50, %v46, 0.0
    %v53 = vadd.f32 %v51, %v52
    %54 = vadd.xlane.f32.xlu0 %v53
    %v55 = vpop.xlane.xlu0 %54
    %v56 = vsel %vm50, %v42, 0.0
    %v57 = vsel %vm50, %v47, 0.0
    %v58 = vadd.f32 %v56, %v57
    %59 = vadd.xlane.f32.xlu0 %v58
    %v60 = vpop.xlane.xlu0 %59
    %v63 = vlaneseq
    %v64 = vand.u32 %v63, 127
    %v65 = vlaneseq
    %v66 = vshrl.u32 %v65, 7
    %v67 = vsub.s32 %v64, %v66
    %v68 = vrot.slane %v55, %v67
    %v69 = vlaneseq
    %v70 = vshrl.u32 %v69, 7
    %v71 = vsub.s32 %v64, %v70
    %v72 = vrot.slane %v60, %v71
    %vm73 = vcmask 1041409
    %v74 = vsel %vm73, %v72, %v68
    %v76 = vadd.f32 %v43, %v74
    %vm77 = vcmask 25600
    %78 = vst.msk [vmem:[#allocation2] sm:$0x3] %vm77, %v76
    // Predicated region
    $region30: #{tpu_custom_call.1} parent=1 // pred_check
      %p79 = pneg %p35
    $region31: #{tpu_custom_call.1} parent=1 // pred_check_branch
      %81 = sbr.rel (%p79) target = $region33
    $region32: #{tpu_custom_call.1} parent=1 // pred_region
      %v82 = vld [vmem:[#allocation2] sm:$0x3]
      %v83 = vmul.f32 %v82, 0.00390625
      %v84 = vld [vmem:[%s1] sm:$0xf]
      %v85 = vld [vmem:[%s2] sm:$0x1]
      %v87 = vlaneseq
      %v88 = vshrl.u32 %v87, 7
      %v89 = vsub.s32 0, %v88
      %v90 = vrot.slane %v85, %v89
      %vm92 = vcmask 31744
      %v94 = vsel %vm92, %v83, 0
      %v97 = vsel %vm50, %v84, 0
      %99 = vmatprep.subr.mxu0 0.0
      %100 = vmatpush1.msra.mxu0 0.0
      %101 = vmatprep.subr.mxu0 0.0
      %102 = vmatpush1.msra.mxu0 0.0
      %103 = vmatprep.subr.mxu0 0.0
      %104 = vmatpush1.msra.mxu0 0.0
      %105 = vmatprep.subr.mxu0 0.0
      %106 = vmatpush1.msra.mxu0 0.0
      %107 = vmatprep.subr.mxu0 0.0
      %108 = vmatpush1.msra.mxu0 0.0
      %109 = vmatprep.subr.mxu0 0.0
      %110 = vmatpush1.msra.mxu0 0.0
      %111 = vmatprep.subr.mxu0 0.0
      %112 = vmatpush1.msra.mxu0 0.0
      %113 = vmatprep.subr.mxu0 0.0
      %114 = vmatpush1.msra.mxu0 0.0
      %115 = vmatprep.subr.mxu0 0.0
      %116 = vmatpush1.msra.mxu0 0.0
      %117 = vmatprep.subr.mxu0 0.0
      %118 = vmatpush1.msra.mxu0 0.0
      %119 = vmatprep.subr.mxu0 0.0
      %120 = vmatpush1.msra.mxu0 0.0
      %121 = vmatprep.subr.mxu0 0.0
      %122 = vmatpush1.msra.mxu0 0.0
      %123 = vmatprep.subr.mxu0 0.0
      %124 = vmatpush1.msra.mxu0 0.0
      %125 = vmatprep.subr.mxu0 0.0
      %126 = vmatpush1.msra.mxu0 0.0
      %127 = vmatprep.subr.mxu0 0.0
      %128 = vmatpush1.msra.mxu0 0.0
      %129 = vmatprep.subr.mxu0 0.0
      %130 = vmatpush1.msra.mxu0 %v97
      %131 = vmatprep.subr.mxu0 0.0
      %132 = vmatpush2.msra.mxu0 0.0
      %133 = vmatprep.subr.mxu0 0.0
      %134 = vmatpush2.msra.mxu0 0.0
      %135 = vmatprep.subr.mxu0 0.0
      %136 = vmatpush2.msra.mxu0 0.0
      %137 = vmatprep.subr.mxu0 0.0
      %138 = vmatpush2.msra.mxu0 0.0
      %139 = vmatprep.subr.mxu0 0.0
      %140 = vmatpush2.msra.mxu0 0.0
      %141 = vmatprep.subr.mxu0 0.0
      %142 = vmatpush2.msra.mxu0 0.0
      %143 = vmatprep.subr.mxu0 0.0
      %144 = vmatpush2.msra.mxu0 0.0
      %145 = vmatprep.subr.mxu0 0.0
      %146 = vmatpush2.msra.mxu0 0.0
      %147 = vmatprep.subr.mxu0 0.0
      %148 = vmatpush2.msra.mxu0 0.0
      %149 = vmatprep.subr.mxu0 0.0
      %150 = vmatpush2.msra.mxu0 0.0
      %151 = vmatprep.subr.mxu0 0.0
      %152 = vmatpush2.msra.mxu0 0.0
      %153 = vmatprep.subr.mxu0 0.0
      %154 = vmatpush2.msra.mxu0 0.0
      %155 = vmatprep.subr.mxu0 0.0
      %156 = vmatpush2.msra.mxu0 0.0
      %157 = vmatprep.subr.mxu0 0.0
      %158 = vmatpush2.msra.mxu0 0.0
      %159 = vmatprep.subr.mxu0 0.0
      %160 = vmatpush2.msra.mxu0 0.0
      %161 = vmatprep.subr.mxu0 0.0
      %162 = vmatpush2.msra.mxu0 0.0
      %163 = vmatprep.mubr.f32.mxu0 0.0
      %164 = vmatmul.mubr.f32.gmra.mxu0 %v94
      %v165 = vpop.f32.mrf.mxu0
      %v166 = vadd.f32 %v90, %v165
      %v167 = vpop.f32.mrf.mxu0
      %168 = vdwg.mxu0
      %v169 = vmax.f32 %v166, 0.0
      %v170 = vld [vmem:[%s3] sm:$0x3]
      %v171 = vld [vmem:[%s4] sm:$0x1]
      %v173 = vlaneseq
      %v174 = vshrl.u32 %v173, 7
      %v175 = vsub.s32 0, %v174
      %v176 = vrot.slane %v171, %v175
      %vm178 = vcmask 15360
      %v180 = vsel %vm178, %v169, 0
      %vm182 = vcmask 1041408
      %v184 = vsel %vm182, %v170, 0
      %186 = vmatprep.subr.mxu0 0.0
      %187 = vmatpush1.msra.mxu0 0.0
      %188 = vmatprep.subr.mxu0 0.0
      %189 = vmatpush1.msra.mxu0 0.0
      %190 = vmatprep.subr.mxu0 0.0
      %191 = vmatpush1.msra.mxu0 0.0
      %192 = vmatprep.subr.mxu0 0.0
      %193 = vmatpush1.msra.mxu0 0.0
      %194 = vmatprep.subr.mxu0 0.0
      %195 = vmatpush1.msra.mxu0 0.0
      %196 = vmatprep.subr.mxu0 0.0
      %197 = vmatpush1.msra.mxu0 0.0
      %198 = vmatprep.subr.mxu0 0.0
      %199 = vmatpush1.msra.mxu0 0.0
      %200 = vmatprep.subr.mxu0 0.0
      %201 = vmatpush1.msra.mxu0 0.0
      %202 = vmatprep.subr.mxu0 0.0
      %203 = vmatpush1.msra.mxu0 0.0
      %204 = vmatprep.subr.mxu0 0.0
      %205 = vmatpush1.msra.mxu0 0.0
      %206 = vmatprep.subr.mxu0 0.0
      %207 = vmatpush1.msra.mxu0 0.0
      %208 = vmatprep.subr.mxu0 0.0
      %209 = vmatpush1.msra.mxu0 0.0
      %210 = vmatprep.subr.mxu0 0.0
      %211 = vmatpush1.msra.mxu0 0.0
      %212 = vmatprep.subr.mxu0 0.0
      %213 = vmatpush1.msra.mxu0 0.0
      %214 = vmatprep.subr.mxu0 0.0
      %215 = vmatpush1.msra.mxu0 0.0
      %216 = vmatprep.subr.mxu0 0.0
      %217 = vmatpush1.msra.mxu0 %v184
      %218 = vmatprep.subr.mxu0 0.0
      %219 = vmatpush2.msra.mxu0 0.0
      %220 = vmatprep.subr.mxu0 0.0
      %221 = vmatpush2.msra.mxu0 0.0
      %222 = vmatprep.subr.mxu0 0.0
      %223 = vmatpush2.msra.mxu0 0.0
      %224 = vmatprep.subr.mxu0 0.0
      %225 = vmatpush2.msra.mxu0 0.0
      %226 = vmatprep.subr.mxu0 0.0
      %227 = vmatpush2.msra.mxu0 0.0
      %228 = vmatprep.subr.mxu0 0.0
      %229 = vmatpush2.msra.mxu0 0.0
      %230 = vmatprep.subr.mxu0 0.0
      %231 = vmatpush2.msra.mxu0 0.0
      %232 = vmatprep.subr.mxu0 0.0
      %233 = vmatpush2.msra.mxu0 0.0
      %234 = vmatprep.subr.mxu0 0.0
      %235 = vmatpush2.msra.mxu0 0.0
      %236 = vmatprep.subr.mxu0 0.0
      %237 = vmatpush2.msra.mxu0 0.0
      %238 = vmatprep.subr.mxu0 0.0
      %239 = vmatpush2.msra.mxu0 0.0
      %240 = vmatprep.subr.mxu0 0.0
      %241 = vmatpush2.msra.mxu0 0.0
      %242 = vmatprep.subr.mxu0 0.0
      %243 = vmatpush2.msra.mxu0 0.0
      %244 = vmatprep.subr.mxu0 0.0
      %245 = vmatpush2.msra.mxu0 0.0
      %246 = vmatprep.subr.mxu0 0.0
      %247 = vmatpush2.msra.mxu0 0.0
      %248 = vmatprep.subr.mxu0 0.0
      %249 = vmatpush2.msra.mxu0 0.0
      %250 = vmatprep.mubr.f32.mxu0 0.0
      %251 = vmatmul.mubr.f32.gmra.mxu0 %v180
      %v252 = vpop.f32.mrf.mxu0
      %v253 = vadd.f32 %v176, %v252
      %v254 = vpop.f32.mrf.mxu0
      %255 = vdwg.mxu0
      %v256 = vxor.u32 %v253, 2147483648
      %v257 = vmul.f32 %v256, 1.442695
      %v258 = vpow.pop %v257
      %v259 = vadd.f32 %v258, 1.0
      %v260 = vrcp.pop %v259
      %v261 = vmul.f32 1.0, %v260
      %262 = vst.msk [vmem:[#allocation6] sm:$0x3] %vm77, %v261
    $region33: #{tpu_custom_call.1} parent=1 // pred_fallthru
      _
    // Predicated region
    $region34: #{tpu_custom_call.1} parent=1 // pred_check
      _
    $region35: #{tpu_custom_call.1} parent=1 // pred_check_branch
      %264 = sbr.rel (0) target = $region37
    $region36: #{tpu_custom_call.1} parent=1 // pred_region
      %s266 = ssub.s32 32, 32
      %267 = vsyncadd [#allocation5], %s266
      %s269 = sshll.u32 [#allocation6], 4
      %s270 = int_to_ptr.vmem [resolvable:$true] %s269
      %272 = dma.vmem_to_hbm [thread:$0]  %s270, 32, %s5, [#allocation5]
    $region37: #{tpu_custom_call.1} parent=1 // pred_fallthru
      _
    // Predicated region
    $region38: #{tpu_custom_call.1} parent=1 // pred_check
      _
    $region39: #{tpu_custom_call.1} parent=1 // pred_check_branch
      %274 = sbr.rel (0) target = $region41
    $region40: #{tpu_custom_call.1} parent=1 // pred_region
      %275 = dma.done [#allocation5], 32
    $region41: #{tpu_custom_call.1} parent=1 // pred_fallthru
      _
    %276 = vsyncpa [#allocation4], 1
    %277 = vsyncpa [#allocation5], 1

</llo_original>
